<compile_context>
chip_gen: v7x
topology: tpu7x:2x2x1
jax: 0.10.0
libtpu: 0.0.40
codegen_flags: <defaults>
</compile_context>

<pallas_src>
import functools

import jax
import jax.numpy as jnp
from jax.experimental import pallas as pl
from jax.experimental.pallas import tpu as pltpu


def _round_up(x, m):
    return (x + m - 1) // m * m


def _mlp_softmax_kernel(x_ref, w1_ref, b1_ref, w2_ref, b2_ref, w3_ref, b3_ref, o_ref):
    # Cast x to bf16 inside the kernel (VPU, hidden under the input DMA); MXU accumulates in f32.
    x = x_ref[...].astype(jnp.bfloat16)

    # layer1: Linear + ReLU (dropout = identity at inference).  ReLU in bf16 after the cast.
    h1 = jnp.dot(x, w1_ref[...], preferred_element_type=jnp.float32) + b1_ref[...]
    h1 = jnp.maximum(h1.astype(jnp.bfloat16), 0.0)

    # layer2: Linear + ReLU
    h2 = jnp.dot(h1, w2_ref[...], preferred_element_type=jnp.float32) + b2_ref[...]
    h2 = jnp.maximum(h2.astype(jnp.bfloat16), 0.0)

    # layer3: Linear, then softmax over dim=1 (feature axis), all in f32
    logits = jnp.dot(h2, w3_ref[...], preferred_element_type=jnp.float32) + b3_ref[...]
    m = jnp.max(logits, axis=1, keepdims=True)
    e = jnp.exp(logits - m)
    denom = jnp.sum(e, axis=1, keepdims=True)
    o_ref[...] = (e * pl.reciprocal(denom, approx=True)).astype(o_ref.dtype)


@functools.partial(jax.jit, static_argnames=("block_m",))
def mlp_forward(x, w1, b1, w2, b2, w3, b3, *, block_m=512):
    batch, input_dim = x.shape
    K1 = w1.shape[1]
    K2 = w2.shape[1]
    output_dim = w3.shape[1]

    # bf16 MXU operands for the weights.  No-op if caller already pre-cast via prepare_params.
    as_bf16 = lambda w: w if w.dtype == jnp.bfloat16 else w.astype(jnp.bfloat16)
    w1, w2, w3 = as_bf16(w1), as_bf16(w2), as_bf16(w3)
    b1 = b1.reshape(1, K1).astype(jnp.float32)
    b2 = b2.reshape(1, K2).astype(jnp.float32)
    b3 = b3.reshape(1, output_dim).astype(jnp.float32)

    # ---- batch tiling -------------------------------------------------------------------------
    batch_r8 = _round_up(batch, 8)
    tm = min(_round_up(block_m, 8), batch_r8)
    # Keep >= 2 grid steps when the batch allows, so "parallel" can use both v7x TensorCores.
    if batch_r8 >= 16:
        tm = min(tm, _round_up(batch_r8 // 2, 8))
    # Pick a tile that divides the 8-rounded batch -> no host-side pad copy in the common case.
    while batch_r8 % tm != 0:
        tm -= 8
    padded = batch_r8
    if padded != batch:  # only when batch is not a multiple of 8
        x = jnp.pad(x, ((0, padded - batch), (0, 0)))

    # ---- VMEM budget --------------------------------------------------------------------------
    w_bytes = (input_dim * K1 + K1 * K2 + K2 * output_dim) * 2            # bf16 weights
    b_bytes = (K1 + K2 + output_dim) * 4                                  # f32 biases
    tile_bytes = 2 * tm * (input_dim * x.dtype.itemsize + output_dim * 4) # double-buffered x/out
    # If double-buffered resident weights would pressure v7x's 64 MiB VMEM, single-buffer them.
    single_buffer_weights = 2 * (w_bytes + b_bytes) > 16 * 1024 * 1024
    wbuf = 1 if single_buffer_weights else 2
    vmem_limit = int(min(64 * 1024 * 1024,
                         max(32 * 1024 * 1024,
                             2 * (wbuf * (w_bytes + b_bytes) + tile_bytes))))

    # Weights/biases: constant block index -> VMEM-resident across grid steps (no re-DMA).
    def resident(shape):
        kwargs = {}
        if single_buffer_weights:
            kwargs["pipeline_mode"] = pl.Buffered(1)
        return pl.BlockSpec(shape, lambda *_: (0,) * len(shape), **kwargs)

    cost = pl.CostEstimate(
        flops=2 * padded * (input_dim * K1 + K1 * K2 + K2 * output_dim),
        transcendentals=padded * output_dim,
        bytes_accessed=(padded * input_dim * x.dtype.itemsize
                        + w_bytes + b_bytes
                        + padded * output_dim * 4),
    )

    out = pl.pallas_call(
        _mlp_softmax_kernel,
        out_shape=jax.ShapeDtypeStruct((padded, output_dim), jnp.float32),
        grid_spec=pltpu.PrefetchScalarGridSpec(
            num_scalar_prefetch=0,
            grid=(padded // tm,),
            in_specs=[
                pl.BlockSpec((tm, input_dim), lambda i: (i, 0)),        # x tile (pipelined, f32)
                resident((input_dim, K1)), resident((1, K1)),           # layer1 W, b
                resident((K1, K2)), resident((1, K2)),                  # layer2 W, b
                resident((K2, output_dim)), resident((1, output_dim)),  # layer3 W, b
            ],
            out_specs=pl.BlockSpec((tm, output_dim), lambda i: (i, 0)),
        ),
        compiler_params=pltpu.CompilerParams(
            dimension_semantics=("parallel",),
            vmem_limit_bytes=vmem_limit,
        ),
        cost_estimate=cost,
    )(x, w1, b1, w2, b2, w3, b3)

    return out[:batch]


def init_params(key, input_dim, K1, K2, output_dim):
    """Deterministic init mimicking PyTorch nn.Linear (uniform +/- 1/sqrt(fan_in)).
    Weights are stored as [in, out] (pre-transposed relative to PyTorch)."""
    ks = jax.random.split(key, 6)

    def lin(kw, kb, fan_in, fan_out):
        bound = 1.0 / jnp.sqrt(fan_in)
        w = jax.random.uniform(kw, (fan_in, fan_out), jnp.float32, -bound, bound)
        b = jax.random.uniform(kb, (1, fan_out), jnp.float32, -bound, bound)
        return w, b

    w1, b1 = lin(ks[0], ks[1], input_dim, K1)
    w2, b2 = lin(ks[2], ks[3], K1, K2)
    w3, b3 = lin(ks[4], ks[5], K2, output_dim)
    return w1, b1, w2, b2, w3, b3


def prepare_params(params):
    """One-time prep: pre-cast weights to bf16 so per-call forward pays no weight-cast HBM traffic."""
    w1, b1, w2, b2, w3, b3 = params
    return (w1.astype(jnp.bfloat16), b1,
            w2.astype(jnp.bfloat16), b2,
            w3.astype(jnp.bfloat16), b3)


if __name__ == "__main__":
    # Small shapes consistent with the module (x is [batch, input_dim]).
    batch, input_dim, K1, K2, output_dim = 128, 32, 64, 48, 16

    key = jax.random.PRNGKey(0)
    k_x, k_p = jax.random.split(key)
    x = jax.random.normal(k_x, (batch, input_dim), jnp.float32)
    params_f32 = init_params(k_p, input_dim, K1, K2, output_dim)
    params = prepare_params(params_f32)   # hoist the weight bf16 casts out of the forward

    # default block_m=512 -> tm=64 here (>=2 grid steps), exercising the tiled / weight-resident path
    out = mlp_forward(x, *params)
    out = jax.block_until_ready(out)

    assert out.shape == (batch, output_dim)
    # sanity: softmax rows sum to ~1 (approx reciprocal -> ~1e-3 relative)
    assert jnp.allclose(jnp.sum(out, axis=1), 1.0, atol=5e-3)

    # pure-JAX reference (same bf16 operand rounding, f32 accumulate)
    w1, b1, w2, b2, w3, b3 = params_f32
    f = lambda a: a.astype(jnp.bfloat16).astype(jnp.float32)
    h1 = jnp.maximum(f(x) @ f(w1) + b1, 0.0)
    h2 = jnp.maximum(f(h1) @ f(w2) + b2, 0.0)
    ref = jax.nn.softmax(f(h2) @ f(w3) + b3, axis=1)
    assert jnp.allclose(out, ref, atol=2e-2), "mismatch vs reference"

    print("KERNEL_OK")
</pallas_src>

<mosaic_0001>
module attributes {stable_mosaic.version = 11 : i64} {
  func.func @_mlp_softmax_kernel(%arg0: i32, %arg1: memref<64x32xf32, #tpu.memory_space<vmem>>, %arg2: memref<32x64xbf16, #tpu.memory_space<vmem>>, %arg3: memref<1x64xf32, #tpu.memory_space<vmem>>, %arg4: memref<64x48xbf16, #tpu.memory_space<vmem>>, %arg5: memref<1x48xf32, #tpu.memory_space<vmem>>, %arg6: memref<48x16xbf16, #tpu.memory_space<vmem>>, %arg7: memref<1x16xf32, #tpu.memory_space<vmem>>, %arg8: memref<64x16xf32, #tpu.memory_space<vmem>>) attributes {dimension_semantics = [#tpu.dimension_semantics<parallel>], iteration_bounds = array<i64: 2>, scalar_prefetch = 0 : i64, scratch_operands = 0 : i64, tpu.core_type = #tpu.core_type<tc>, window_params = [{transform_indices = @transform_0, window_bounds = array<i64: 64, 32>}, {pipeline_mode = #tpu.pipeline_mode<synchronous>, transform_indices = @transform_1, window_bounds = array<i64: 32, 64>}, {pipeline_mode = #tpu.pipeline_mode<synchronous>, transform_indices = @transform_2, window_bounds = array<i64: 1, 64>}, {pipeline_mode = #tpu.pipeline_mode<synchronous>, transform_indices = @transform_3, window_bounds = array<i64: 64, 48>}, {pipeline_mode = #tpu.pipeline_mode<synchronous>, transform_indices = @transform_4, window_bounds = array<i64: 1, 48>}, {pipeline_mode = #tpu.pipeline_mode<synchronous>, transform_indices = @transform_5, window_bounds = array<i64: 48, 16>}, {pipeline_mode = #tpu.pipeline_mode<synchronous>, transform_indices = @transform_6, window_bounds = array<i64: 1, 16>}, {transform_indices = @transform_7, window_bounds = array<i64: 64, 16>}]} {
    %c0 = arith.constant 0 : index
    %c0_0 = arith.constant 0 : index
    %0 = vector.load %arg1[%c0, %c0_0] : memref<64x32xf32, #tpu.memory_space<vmem>>, vector<64x32xf32>
    %1 = arith.truncf %0 : vector<64x32xf32> to vector<64x32xbf16>
    %c0_1 = arith.constant 0 : index
    %c0_2 = arith.constant 0 : index
    %2 = vector.load %arg2[%c0_1, %c0_2] : memref<32x64xbf16, #tpu.memory_space<vmem>>, vector<32x64xbf16>
    %cst = arith.constant dense<0.000000e+00> : vector<64x64xf32>
    %3 = tpu.matmul %1, %2, %cst {dimension_numbers = #tpu.dot_dimension_numbers<[1], [0], [0], [1], [0, 0, 1, 1], [], []>} : vector<64x32xbf16>, vector<32x64xbf16>, vector<64x64xf32> -> vector<64x64xf32>
    %c0_3 = arith.constant 0 : index
    %c0_4 = arith.constant 0 : index
    %4 = vector.load %arg3[%c0_3, %c0_4] : memref<1x64xf32, #tpu.memory_space<vmem>>, vector<1x64xf32>
    %5 = vector.broadcast %4 : vector<1x64xf32> to vector<64x64xf32>
    %6 = arith.addf %3, %5 : vector<64x64xf32>
    %7 = arith.truncf %6 : vector<64x64xf32> to vector<64x64xbf16>
    %cst_5 = arith.constant 0.000000e+00 : bf16
    %8 = vector.broadcast %cst_5 : bf16 to vector<64x64xbf16>
    %9 = arith.maximumf %7, %8 : vector<64x64xbf16>
    %c0_6 = arith.constant 0 : index
    %c0_7 = arith.constant 0 : index
    %10 = vector.load %arg4[%c0_6, %c0_7] : memref<64x48xbf16, #tpu.memory_space<vmem>>, vector<64x48xbf16>
    %cst_8 = arith.constant dense<0.000000e+00> : vector<64x48xf32>
    %11 = tpu.matmul %9, %10, %cst_8 {dimension_numbers = #tpu.dot_dimension_numbers<[1], [0], [0], [1], [0, 0, 1, 1], [], []>} : vector<64x64xbf16>, vector<64x48xbf16>, vector<64x48xf32> -> vector<64x48xf32>
    %c0_9 = arith.constant 0 : index
    %c0_10 = arith.constant 0 : index
    %12 = vector.load %arg5[%c0_9, %c0_10] : memref<1x48xf32, #tpu.memory_space<vmem>>, vector<1x48xf32>
    %13 = vector.broadcast %12 : vector<1x48xf32> to vector<64x48xf32>
    %14 = arith.addf %11, %13 : vector<64x48xf32>
    %15 = arith.truncf %14 : vector<64x48xf32> to vector<64x48xbf16>
    %cst_11 = arith.constant 0.000000e+00 : bf16
    %16 = vector.broadcast %cst_11 : bf16 to vector<64x48xbf16>
    %17 = arith.maximumf %15, %16 : vector<64x48xbf16>
    %c0_12 = arith.constant 0 : index
    %c0_13 = arith.constant 0 : index
    %18 = vector.load %arg6[%c0_12, %c0_13] : memref<48x16xbf16, #tpu.memory_space<vmem>>, vector<48x16xbf16>
    %cst_14 = arith.constant dense<0.000000e+00> : vector<64x16xf32>
    %19 = tpu.matmul %17, %18, %cst_14 {dimension_numbers = #tpu.dot_dimension_numbers<[1], [0], [0], [1], [0, 0, 1, 1], [], []>} : vector<64x48xbf16>, vector<48x16xbf16>, vector<64x16xf32> -> vector<64x16xf32>
    %c0_15 = arith.constant 0 : index
    %c0_16 = arith.constant 0 : index
    %20 = vector.load %arg7[%c0_15, %c0_16] : memref<1x16xf32, #tpu.memory_space<vmem>>, vector<1x16xf32>
    %21 = vector.broadcast %20 : vector<1x16xf32> to vector<64x16xf32>
    %22 = arith.addf %19, %21 : vector<64x16xf32>
    %cst_17 = arith.constant dense<0xFF800000> : vector<64xf32>
    %23 = vector.multi_reduction <maximumf>, %22, %cst_17 [1] : vector<64x16xf32> to vector<64xf32>
    %24 = vector.shape_cast %23 : vector<64xf32> to vector<64x1xf32>
    %25 = vector.broadcast %24 : vector<64x1xf32> to vector<64x16xf32>
    %26 = arith.subf %22, %25 : vector<64x16xf32>
    %27 = math.exp %26 : vector<64x16xf32>
    %cst_18 = arith.constant dense<0.000000e+00> : vector<64xf32>
    %28 = vector.multi_reduction <add>, %27, %cst_18 [1] : vector<64x16xf32> to vector<64xf32>
    %29 = vector.shape_cast %28 : vector<64xf32> to vector<64x1xf32>
    %30 = tpu.reciprocal %29 {approx = true} : vector<64x1xf32> -> vector<64x1xf32>
    %31 = vector.broadcast %30 : vector<64x1xf32> to vector<64x16xf32>
    %32 = arith.mulf %27, %31 : vector<64x16xf32>
    %c0_19 = arith.constant 0 : index
    %c0_20 = arith.constant 0 : index
    %33 = vector.load %arg8[%c0_19, %c0_20] : memref<64x16xf32, #tpu.memory_space<vmem>>, vector<64x16xf32>
    tpu.vector_store %arg8[%c0_19, %c0_20], %32 {strides = array<i32>} : memref<64x16xf32, #tpu.memory_space<vmem>>, vector<64x16xf32>,
    return
  }
  func.func @transform_0(%arg0: i32) -> (i32, i32) {
    %c0_i32 = arith.constant 0 : i32
    %c0_i32_0 = arith.constant 0 : i32
    return %arg0, %c0_i32 : i32, i32
  }
  func.func @transform_1(%arg0: i32) -> (i32, i32) {
    %c0_i32 = arith.constant 0 : i32
    %c0_i32_0 = arith.constant 0 : i32
    %c0_i32_1 = arith.constant 0 : i32
    return %c0_i32, %c0_i32_0 : i32, i32
  }
  func.func @transform_2(%arg0: i32) -> (i32, i32) {
    %c0_i32 = arith.constant 0 : i32
    %c0_i32_0 = arith.constant 0 : i32
    %c0_i32_1 = arith.constant 0 : i32
    return %c0_i32, %c0_i32_0 : i32, i32
  }
  func.func @transform_3(%arg0: i32) -> (i32, i32) {
    %c0_i32 = arith.constant 0 : i32
    %c0_i32_0 = arith.constant 0 : i32
    %c0_i32_1 = arith.constant 0 : i32
    return %c0_i32, %c0_i32_0 : i32, i32
  }
  func.func @transform_4(%arg0: i32) -> (i32, i32) {
    %c0_i32 = arith.constant 0 : i32
    %c0_i32_0 = arith.constant 0 : i32
    %c0_i32_1 = arith.constant 0 : i32
    return %c0_i32, %c0_i32_0 : i32, i32
  }
  func.func @transform_5(%arg0: i32) -> (i32, i32) {
    %c0_i32 = arith.constant 0 : i32
    %c0_i32_0 = arith.constant 0 : i32
    %c0_i32_1 = arith.constant 0 : i32
    return %c0_i32, %c0_i32_0 : i32, i32
  }
  func.func @transform_6(%arg0: i32) -> (i32, i32) {
    %c0_i32 = arith.constant 0 : i32
    %c0_i32_0 = arith.constant 0 : i32
    %c0_i32_1 = arith.constant 0 : i32
    return %c0_i32, %c0_i32_0 : i32, i32
  }
  func.func @transform_7(%arg0: i32) -> (i32, i32) {
    %c0_i32 = arith.constant 0 : i32
    %c0_i32_0 = arith.constant 0 : i32
    return %arg0, %c0_i32 : i32, i32
  }
}

</mosaic_0001>

<llo_original>
// kernel: mlp_forward.1
$region0: #{mlp_forward.1}
  #allocation0 [shape = 'u32[]', space=smem, size = 0x4, offset = 0x4, fixed_abs, tag = 'smem constant byte address 0x4 - core index']
  #allocation1 [shape = 'u32[144,128]{1,0:T(1,128)}', space=vmem, size = 0x12000, scoped, tag = 'internal scratch']
  %s0 = inlined_call_operand.vmem [shape: f32[128,32], index: 0, kind: input, shape index: {}]
  %s1 = inlined_call_operand.vmem [shape: bf16[32,64], index: 1, kind: input, shape index: {}]
  %s2 = inlined_call_operand.vmem [shape: f32[1,64], index: 2, kind: input, shape index: {}]
  %s3 = inlined_call_operand.vmem [shape: bf16[64,48], index: 3, kind: input, shape index: {}]
  %s4 = inlined_call_operand.vmem [shape: f32[1,48], index: 4, kind: input, shape index: {}]
  %s5 = inlined_call_operand.vmem [shape: bf16[48,16], index: 5, kind: input, shape index: {}]
  %s6 = inlined_call_operand.vmem [shape: f32[1,16], index: 6, kind: input, shape index: {}]
  %s7 = inlined_call_operand.vmem [shape: f32[128,16], index: 7, kind: output, shape index: {}]
  %s8 = sld [smem:[#allocation0]]
  $region61: #{mlp_forward.1} parent=0
    _
  %s10 = ssub.s32 1, %s8
  %s11 = scalar_select 0, %s10, %s8
  loop: start=0, step=1, limit=4
  $region2: #{mlp_forward.1} parent=0 // loop_pre_header
    _
  $region3: #{mlp_forward.1} parent=0 // loop_header
    %s13 = sphi 0, %s17
    %p14 = scmp.ge.s32.totalorder %s13, 4
    %s23 = sphi 0, %s25
    %s26 = sphi 0, %s23
    %s27 = sphi 0, %s26
    %s43 = sphi 0, %s27
    %s47 = sphi 0, %s47
    %s49 = sphi 0, %s47
    %s50 = sphi 0, %s49
    %s64 = sphi 0, %s50
    %s68 = sphi 0, %s68
    %s70 = sphi 0, %s68
    %s71 = sphi 0, %s70
    %s85 = sphi 0, %s71
    %s89 = sphi 0, %s89
    %s91 = sphi 0, %s89
    %s92 = sphi 0, %s91
    %s106 = sphi 0, %s92
    %s110 = sphi 0, %s110
    %s112 = sphi 0, %s110
    %s113 = sphi 0, %s112
    %s127 = sphi 0, %s113
    %s131 = sphi 0, %s131
    %s133 = sphi 0, %s131
    %s134 = sphi 0, %s133
    %s148 = sphi 0, %s134
    %s152 = sphi 0, %s152
    %s154 = sphi 0, %s152
    %s155 = sphi 0, %s154
    %s169 = sphi 0, %s155
    %s175 = sphi 0, %s177
    %s178 = sphi 0, %s175
    %s179 = sphi 0, %s178
    %s195 = sphi 0, %s179
  $region4: #{mlp_forward.1} parent=0 // loop_header_branch
    %16 = sbr.rel (%p14) target = $region8
  $region5: #{mlp_forward.1} parent=0 // loop_body
    %s18 = ssub.s32 %s13, 1
    %s19 = ssub.s32 %s13, 2
    %s20 = sadd.s32 %s13, 1
    %s21 = ssub.s32 %s13, %s20
    %p22 = scmp.eq.s32.totalorder %s21, 0
    %s24 = sadd.s32 %s23, 1
    %s25 = scalar_select %p22, %s23, %s24
    %p28 = pneg %p22
    %p29 = scmp.eq.s32.totalorder %s13, 1
    %p30 = por %p28, %p29
    %p31 = scmp.ne.s32.totalorder %s23, %s26
    %p32 = scmp.eq.s32.totalorder %s13, 0
    %p33 = por %p31, %p32
    %p34 = scmp.ne.s32.totalorder %s23, %s26
    %p35 = scmp.eq.s32.totalorder %s18, 1
    %p36 = por %p34, %p35
    %p37 = scmp.ne.s32.totalorder %s26, %s27
    %p38 = scmp.eq.s32.totalorder %s18, 0
    %p39 = por %p37, %p38
    %p40 = scmp.ne.s32.totalorder %s26, %s27
    %p41 = scmp.eq.s32.totalorder %s19, 1
    %p42 = por %p40, %p41
    %p44 = scmp.ne.s32.totalorder %s27, %s43
    %p45 = scmp.eq.s32.totalorder %s19, 0
    %p46 = por %p44, %p45
    %s48 = sadd.s32 %s47, 1
    %p51 = scmp.eq.s32.totalorder %s13, 1
    %p52 = scmp.ne.s32.totalorder %s47, %s49
    %p53 = scmp.eq.s32.totalorder %s13, 0
    %p54 = por %p52, %p53
    %p55 = scmp.ne.s32.totalorder %s47, %s49
    %p56 = scmp.eq.s32.totalorder %s18, 1
    %p57 = por %p55, %p56
    %p58 = scmp.ne.s32.totalorder %s49, %s50
    %p59 = scmp.eq.s32.totalorder %s18, 0
    %p60 = por %p58, %p59
    %p61 = scmp.ne.s32.totalorder %s49, %s50
    %p62 = scmp.eq.s32.totalorder %s19, 1
    %p63 = por %p61, %p62
    %p65 = scmp.ne.s32.totalorder %s50, %s64
    %p66 = scmp.eq.s32.totalorder %s19, 0
    %p67 = por %p65, %p66
    %s69 = sadd.s32 %s68, 1
    %p72 = scmp.eq.s32.totalorder %s13, 1
    %p73 = scmp.ne.s32.totalorder %s68, %s70
    %p74 = scmp.eq.s32.totalorder %s13, 0
    %p75 = por %p73, %p74
    %p76 = scmp.ne.s32.totalorder %s68, %s70
    %p77 = scmp.eq.s32.totalorder %s18, 1
    %p78 = por %p76, %p77
    %p79 = scmp.ne.s32.totalorder %s70, %s71
    %p80 = scmp.eq.s32.totalorder %s18, 0
    %p81 = por %p79, %p80
    %p82 = scmp.ne.s32.totalorder %s70, %s71
    %p83 = scmp.eq.s32.totalorder %s19, 1
    %p84 = por %p82, %p83
    %p86 = scmp.ne.s32.totalorder %s71, %s85
    %p87 = scmp.eq.s32.totalorder %s19, 0
    %p88 = por %p86, %p87
    %s90 = sadd.s32 %s89, 1
    %p93 = scmp.eq.s32.totalorder %s13, 1
    %p94 = scmp.ne.s32.totalorder %s89, %s91
    %p95 = scmp.eq.s32.totalorder %s13, 0
    %p96 = por %p94, %p95
    %p97 = scmp.ne.s32.totalorder %s89, %s91
    %p98 = scmp.eq.s32.totalorder %s18, 1
    %p99 = por %p97, %p98
    %p100 = scmp.ne.s32.totalorder %s91, %s92
    %p101 = scmp.eq.s32.totalorder %s18, 0
    %p102 = por %p100, %p101
    %p103 = scmp.ne.s32.totalorder %s91, %s92
    %p104 = scmp.eq.s32.totalorder %s19, 1
    %p105 = por %p103, %p104
    %p107 = scmp.ne.s32.totalorder %s92, %s106
    %p108 = scmp.eq.s32.totalorder %s19, 0
    %p109 = por %p107, %p108
    %s111 = sadd.s32 %s110, 1
    %p114 = scmp.eq.s32.totalorder %s13, 1
    %p115 = scmp.ne.s32.totalorder %s110, %s112
    %p116 = scmp.eq.s32.totalorder %s13, 0
    %p117 = por %p115, %p116
    %p118 = scmp.ne.s32.totalorder %s110, %s112
    %p119 = scmp.eq.s32.totalorder %s18, 1
    %p120 = por %p118, %p119
    %p121 = scmp.ne.s32.totalorder %s112, %s113
    %p122 = scmp.eq.s32.totalorder %s18, 0
    %p123 = por %p121, %p122
    %p124 = scmp.ne.s32.totalorder %s112, %s113
    %p125 = scmp.eq.s32.totalorder %s19, 1
    %p126 = por %p124, %p125
    %p128 = scmp.ne.s32.totalorder %s113, %s127
    %p129 = scmp.eq.s32.totalorder %s19, 0
    %p130 = por %p128, %p129
    %s132 = sadd.s32 %s131, 1
    %p135 = scmp.eq.s32.totalorder %s13, 1
    %p136 = scmp.ne.s32.totalorder %s131, %s133
    %p137 = scmp.eq.s32.totalorder %s13, 0
    %p138 = por %p136, %p137
    %p139 = scmp.ne.s32.totalorder %s131, %s133
    %p140 = scmp.eq.s32.totalorder %s18, 1
    %p141 = por %p139, %p140
    %p142 = scmp.ne.s32.totalorder %s133, %s134
    %p143 = scmp.eq.s32.totalorder %s18, 0
    %p144 = por %p142, %p143
    %p145 = scmp.ne.s32.totalorder %s133, %s134
    %p146 = scmp.eq.s32.totalorder %s19, 1
    %p147 = por %p145, %p146
    %p149 = scmp.ne.s32.totalorder %s134, %s148
    %p150 = scmp.eq.s32.totalorder %s19, 0
    %p151 = por %p149, %p150
    %s153 = sadd.s32 %s152, 1
    %p156 = scmp.eq.s32.totalorder %s13, 1
    %p157 = scmp.ne.s32.totalorder %s152, %s154
    %p158 = scmp.eq.s32.totalorder %s13, 0
    %p159 = por %p157, %p158
    %p160 = scmp.ne.s32.totalorder %s152, %s154
    %p161 = scmp.eq.s32.totalorder %s18, 1
    %p162 = por %p160, %p161
    %p163 = scmp.ne.s32.totalorder %s154, %s155
    %p164 = scmp.eq.s32.totalorder %s18, 0
    %p165 = por %p163, %p164
    %p166 = scmp.ne.s32.totalorder %s154, %s155
    %p167 = scmp.eq.s32.totalorder %s19, 1
    %p168 = por %p166, %p167
    %p170 = scmp.ne.s32.totalorder %s155, %s169
    %p171 = scmp.eq.s32.totalorder %s19, 0
    %p172 = por %p170, %p171
    %s173 = ssub.s32 %s13, %s20
    %p174 = scmp.eq.s32.totalorder %s173, 0
    %s176 = sadd.s32 %s175, 1
    %s177 = scalar_select %p174, %s175, %s176
    %p180 = pneg %p174
    %p181 = scmp.eq.s32.totalorder %s13, 1
    %p182 = por %p180, %p181
    %p183 = scmp.ne.s32.totalorder %s175, %s178
    %p184 = scmp.eq.s32.totalorder %s13, 0
    %p185 = por %p183, %p184
    %p186 = scmp.ne.s32.totalorder %s175, %s178
    %p187 = scmp.eq.s32.totalorder %s18, 1
    %p188 = por %p186, %p187
    %p189 = scmp.ne.s32.totalorder %s178, %s179
    %p190 = scmp.eq.s32.totalorder %s18, 0
    %p191 = por %p189, %p190
    %p192 = scmp.ne.s32.totalorder %s178, %s179
    %p193 = scmp.eq.s32.totalorder %s19, 1
    %p194 = por %p192, %p193
    %p196 = scmp.ne.s32.totalorder %s179, %s195
    %p197 = scmp.eq.s32.totalorder %s19, 0
    %p198 = por %p196, %p197
    %p199 = scmp.le.s32.totalorder 1, %s13
    %p200 = scmp.lt.s32.totalorder %s13, 3
    %p201 = pnand %p199, %p200
    %p202 = pneg %p201
    // Predicated region
    $region9: #{mlp_forward.1} parent=5 // pred_check
      _
    $region10: #{mlp_forward.1} parent=5 // pred_check_branch
      %204 = sbr.rel (%p201) target = $region12
    $region11: #{mlp_forward.1} parent=5 // pred_region
      %s205 = ssub.s32 %s13, 1
      // Predicated region
      $region13: #{mlp_forward.1} parent=11 // pred_check
        %p206 = pneg %p60
      $region14: #{mlp_forward.1} parent=11 // pred_check_branch
        %208 = sbr.rel (%p206) target = $region16
      $region15: #{mlp_forward.1} parent=11 // pred_region
        _
      $region16: #{mlp_forward.1} parent=11 // pred_fallthru
        _
      // Predicated region
      $region17: #{mlp_forward.1} parent=11 // pred_check
        %p209 = pneg %p81
      $region18: #{mlp_forward.1} parent=11 // pred_check_branch
        %211 = sbr.rel (%p209) target = $region20
      $region19: #{mlp_forward.1} parent=11 // pred_region
        _
      $region20: #{mlp_forward.1} parent=11 // pred_fallthru
        _
      // Predicated region
      $region21: #{mlp_forward.1} parent=11 // pred_check
        %p212 = pneg %p102
      $region22: #{mlp_forward.1} parent=11 // pred_check_branch
        %214 = sbr.rel (%p212) target = $region24
      $region23: #{mlp_forward.1} parent=11 // pred_region
        _
      $region24: #{mlp_forward.1} parent=11 // pred_fallthru
        _
      // Predicated region
      $region25: #{mlp_forward.1} parent=11 // pred_check
        %p215 = pneg %p123
      $region26: #{mlp_forward.1} parent=11 // pred_check_branch
        %217 = sbr.rel (%p215) target = $region28
      $region27: #{mlp_forward.1} parent=11 // pred_region
        _
      $region28: #{mlp_forward.1} parent=11 // pred_fallthru
        _
      // Predicated region
      $region29: #{mlp_forward.1} parent=11 // pred_check
        %p218 = pneg %p144
      $region30: #{mlp_forward.1} parent=11 // pred_check_branch
        %220 = sbr.rel (%p218) target = $region32
      $region31: #{mlp_forward.1} parent=11 // pred_region
        _
      $region32: #{mlp_forward.1} parent=11 // pred_fallthru
        _
      // Predicated region
      $region33: #{mlp_forward.1} parent=11 // pred_check
        %p221 = pneg %p165
      $region34: #{mlp_forward.1} parent=11 // pred_check_branch
        %223 = sbr.rel (%p221) target = $region36
      $region35: #{mlp_forward.1} parent=11 // pred_region
        _
      $region36: #{mlp_forward.1} parent=11 // pred_fallthru
        _
    $region12: #{mlp_forward.1} parent=5 // pred_fallthru
      _
    %p224 = scmp.lt.s32.totalorder %s13, 2
    // Predicated region
    $region37: #{mlp_forward.1} parent=5 // pred_check
      %p225 = pneg %p224
    $region38: #{mlp_forward.1} parent=5 // pred_check_branch
      %227 = sbr.rel (%p225) target = $region40
    $region39: #{mlp_forward.1} parent=5 // pred_region
      // Predicated region
      $region41: #{mlp_forward.1} parent=39 // pred_check
        %p228 = pneg %p33
      $region42: #{mlp_forward.1} parent=39 // pred_check_branch
        %230 = sbr.rel (%p228) target = $region44
      $region43: #{mlp_forward.1} parent=39 // pred_region
        %s231 = smul.u32 8, %s13
        %p232 = scmp.lt.s32.totalorder %s231, 15
        %s233 = scalar_select %p232, %s231, 15
        %s234 = smul.addr %s233, 8
        %s235 = scalar_lea.vmem %s0, %s234
        %s236 = smul.u32 8, %s13
      $region44: #{mlp_forward.1} parent=39 // pred_fallthru
        _
    $region40: #{mlp_forward.1} parent=5 // pred_fallthru
      _
    %p237 = scmp.le.s32.totalorder 1, %s13
    %p238 = scmp.lt.s32.totalorder %s13, 3
    %p239 = pnand %p237, %p238
    %p240 = pneg %p239
    // Predicated region
    $region45: #{mlp_forward.1} parent=5 // pred_check
      _
    $region46: #{mlp_forward.1} parent=5 // pred_check_branch
      %242 = sbr.rel (%p239) target = $region48
    $region47: #{mlp_forward.1} parent=5 // pred_region
      %s243 = ssub.s32 %s13, 1
      %s244 = smul.u32 8, %s18
      %p245 = scmp.lt.s32.totalorder %s244, 15
      %s246 = scalar_select %p245, %s244, 15
      %s247 = smul.addr %s246, 8
      %s248 = scalar_lea.vmem %s0, %s247
      %p249 = pneg %p39
      %p250 = pneg %p36
      %p251 = pneg %p60
      %p252 = pneg %p57
      %p253 = pneg %p81
      %p254 = pneg %p78
      %p255 = pneg %p102
      %p256 = pneg %p99
      %p257 = pneg %p123
      %p258 = pneg %p120
      %p259 = pneg %p144
      %p260 = pneg %p141
      %p261 = pneg %p165
      %p262 = pneg %p162
      %p263 = pneg %p191
      %p264 = pneg %p188
      %s265 = smul.u32 8, %s18
      %p266 = scmp.lt.s32.totalorder %s265, 15
      %s267 = scalar_select %p266, %s265, 15
      %s268 = smul.addr %s267, 8
      %s269 = scalar_lea.vmem %s7, %s268
      %s270 = smul.u32 8, %s18
      %p271 = scmp.lt.s32.totalorder %s270, 15
      %s272 = scalar_select %p271, %s270, 15
      %s273 = smul.addr %s272, 8
      %s274 = scalar_lea.vmem %s0, %s273
      %s275 = smul.u32 8, %s18
      %s276 = smul.u32 8, %s18
      %p277 = scmp.lt.s32.totalorder %s276, 15
      %s278 = scalar_select %p277, %s276, 15
      %s279 = smul.addr %s278, 8
      %s280 = scalar_lea.vmem %s7, %s279
      %s281 = smul.u32 8, %s18
      %v283 = vld [vmem:[%s274] sm:$0xff]
      %v284 = vld [vmem:[%s274 + $0x8] sm:$0xff]
      %v285 = vld [vmem:[%s274 + $0x10] sm:$0xff]
      %v286 = vld [vmem:[%s274 + $0x18] sm:$0xff]
      %v287 = vld [vmem:[%s274 + $0x20] sm:$0xff]
      %v288 = vld [vmem:[%s274 + $0x28] sm:$0xff]
      %v289 = vld [vmem:[%s274 + $0x30] sm:$0xff]
      %v290 = vld [vmem:[%s274 + $0x38] sm:$0xff]
      %v291 = vpack.c.bf16 %v284, %v283
      %v292 = vpack.c.bf16 %v286, %v285
      %v293 = vpack.c.bf16 %v288, %v287
      %v294 = vpack.c.bf16 %v290, %v289
      %v295 = vld [vmem:[%s1] sm:$0xf]
      %v296 = vld [vmem:[%s1 + $0x4] sm:$0xf]
      %v297 = vld [vmem:[%s1 + $0x8] sm:$0xf]
      %v298 = vld [vmem:[%s1 + $0xc] sm:$0xf]
      %v299 = vld [vmem:[%s2] sm:$0x1]
      %v301 = vlaneseq
      %v302 = vshrl.u32 %v301, 7
      %v303 = vsub.s32 0, %v302
      %v304 = vrot.slane %v299, %v303
      %v310 = vunpack.c.l.b16 %v295
      %v311 = vunpack.c.l.b16 %v296
      %v312 = vunpack.c.l.b16 %v297
      %v313 = vunpack.c.l.b16 %v298
      %v314 = vpack.c.b16 %v311, %v310
      %v315 = vpack.c.b16 %v313, %v312
      %vm318 = vcmask 261120
      %v320 = vsel %vm318, %v291, 0
      %v323 = vsel %vm318, %v292, 0
      %v326 = vsel %vm318, %v293, 0
      %v329 = vsel %vm318, %v294, 0
      %331 = vmatprep.subr.bf16.mxu0 0
      %332 = vmatpush1.bf16.msra.mxu0 %v314
      %333 = vmatprep.subr.bf16.mxu0 0
      %334 = vmatpush1.bf16.msra.mxu0 %v315
      %335 = vmatprep.subr.bf16.mxu0 0
      %336 = vmatpush1.bf16.msra.mxu0 0
      %337 = vmatprep.subr.bf16.mxu0 0
      %338 = vmatpush1.bf16.msra.mxu0 0
      %339 = vmatprep.subr.bf16.mxu0 0
      %340 = vmatpush1.bf16.msra.mxu0 0
      %341 = vmatprep.subr.bf16.mxu0 0
      %342 = vmatpush1.bf16.msra.mxu0 0
      %343 = vmatprep.subr.bf16.mxu0 0
      %344 = vmatpush1.bf16.msra.mxu0 0
      %345 = vmatprep.subr.bf16.mxu0 0
      %346 = vmatpush1.bf16.msra.mxu0 0
      %347 = vmatprep.subr.bf16.mxu0 0
      %348 = vmatpush1.bf16.msra.mxu0 0
      %349 = vmatprep.subr.bf16.mxu0 0
      %350 = vmatpush1.bf16.msra.mxu0 0
      %351 = vmatprep.subr.bf16.mxu0 0
      %352 = vmatpush1.bf16.msra.mxu0 0
      %353 = vmatprep.subr.bf16.mxu0 0
      %354 = vmatpush1.bf16.msra.mxu0 0
      %355 = vmatprep.subr.bf16.mxu0 0
      %356 = vmatpush1.bf16.msra.mxu0 0
      %357 = vmatprep.subr.bf16.mxu0 0
      %358 = vmatpush1.bf16.msra.mxu0 0
      %359 = vmatprep.subr.bf16.mxu0 0
      %360 = vmatpush1.bf16.msra.mxu0 0
      %361 = vmatprep.subr.bf16.mxu0 0
      %362 = vmatpush1.bf16.msra.mxu0 0
      %363 = vmatprep.mubr.bf16.mxu0 0
      %364 = vmatmul.mubr.bf16.gmra.mrb[0].mxu0 %v320
      %v365 = vpop.f32.mrb[0].mxu0
      %v366 = vadd.f32 %v304, %v365
      %v367 = vpop.f32.mrb[0].mxu0
      %v368 = vpop.f32.mrb[0].mxu0
      %v369 = vadd.f32 %v304, %v368
      %v370 = vpop.f32.mrb[0].mxu0
      %371 = vmatprep.mubr.bf16.mxu0 0
      %372 = vmatmul.mubr.bf16.gmra.mrb[0].mxu0 %v323
      %v373 = vpop.f32.mrb[0].mxu0
      %v374 = vadd.f32 %v304, %v373
      %v375 = vpop.f32.mrb[0].mxu0
      %v376 = vpop.f32.mrb[0].mxu0
      %v377 = vadd.f32 %v304, %v376
      %v378 = vpop.f32.mrb[0].mxu0
      %379 = vmatprep.mubr.bf16.mxu0 0
      %380 = vmatmul.mubr.bf16.gmra.mrb[0].mxu0 %v326
      %v381 = vpop.f32.mrb[0].mxu0
      %v382 = vadd.f32 %v304, %v381
      %v383 = vpop.f32.mrb[0].mxu0
      %v384 = vpop.f32.mrb[0].mxu0
      %v385 = vadd.f32 %v304, %v384
      %v386 = vpop.f32.mrb[0].mxu0
      %387 = vmatprep.mubr.bf16.mxu0 0
      %388 = vmatmul.mubr.bf16.gmra.mrb[0].mxu0 %v329
      %v389 = vpop.f32.mrb[0].mxu0
      %v390 = vadd.f32 %v304, %v389
      %v391 = vpop.f32.mrb[0].mxu0
      %v392 = vpop.f32.mrb[0].mxu0
      %v393 = vadd.f32 %v304, %v392
      %v394 = vpop.f32.mrb[0].mxu0
      %395 = vdwg.mxu0
      %v396 = vpack.c.bf16 %v369, %v366
      %v397 = vpack.c.bf16 %v377, %v374
      %v398 = vpack.c.bf16 %v385, %v382
      %v399 = vpack.c.bf16 %v393, %v390
      %v400 = vmax.bf16 %v396, 0
      %v401 = vmax.bf16 %v397, 0
      %v402 = vmax.bf16 %v398, 0
      %v403 = vmax.bf16 %v399, 0
      %v404 = vld [vmem:[%s3] sm:$0xf]
      %v405 = vld [vmem:[%s3 + $0x4] sm:$0xf]
      %v406 = vld [vmem:[%s3 + $0x8] sm:$0xf]
      %v407 = vld [vmem:[%s3 + $0xc] sm:$0xf]
      %v408 = vld [vmem:[%s3 + $0x10] sm:$0xf]
      %v409 = vld [vmem:[%s3 + $0x14] sm:$0xf]
      %v410 = vld [vmem:[%s3 + $0x18] sm:$0xf]
      %v411 = vld [vmem:[%s3 + $0x1c] sm:$0xf]
      %v412 = vld [vmem:[%s4] sm:$0x1]
      %v414 = vlaneseq
      %v415 = vshrl.u32 %v414, 7
      %v416 = vsub.s32 0, %v415
      %v417 = vrot.slane %v412, %v416
      %v427 = vunpack.c.l.b16 %v404
      %v428 = vunpack.c.l.b16 %v405
      %v429 = vunpack.c.l.b16 %v406
      %v430 = vunpack.c.l.b16 %v407
      %v431 = vunpack.c.l.b16 %v408
      %v432 = vunpack.c.l.b16 %v409
      %v433 = vunpack.c.l.b16 %v410
      %v434 = vunpack.c.l.b16 %v411
      %v435 = vpack.c.b16 %v428, %v427
      %v436 = vpack.c.b16 %v430, %v429
      %v437 = vpack.c.b16 %v432, %v431
      %v438 = vpack.c.b16 %v434, %v433
      %vm443 = vcmask 523264
      %v445 = vsel %vm443, %v400, 0
      %v448 = vsel %vm443, %v401, 0
      %v451 = vsel %vm443, %v402, 0
      %v454 = vsel %vm443, %v403, 0
      %456 = vmatprep.subr.bf16.mxu0 0
      %457 = vmatpush1.bf16.msra.mxu0 %v435
      %458 = vmatprep.subr.bf16.mxu0 0
      %459 = vmatpush1.bf16.msra.mxu0 %v436
      %460 = vmatprep.subr.bf16.mxu0 0
      %461 = vmatpush1.bf16.msra.mxu0 %v437
      %462 = vmatprep.subr.bf16.mxu0 0
      %463 = vmatpush1.bf16.msra.mxu0 %v438
      %464 = vmatprep.subr.bf16.mxu0 0
      %465 = vmatpush1.bf16.msra.mxu0 0
      %466 = vmatprep.subr.bf16.mxu0 0
      %467 = vmatpush1.bf16.msra.mxu0 0
      %468 = vmatprep.subr.bf16.mxu0 0
      %469 = vmatpush1.bf16.msra.mxu0 0
      %470 = vmatprep.subr.bf16.mxu0 0
      %471 = vmatpush1.bf16.msra.mxu0 0
      %472 = vmatprep.subr.bf16.mxu0 0
      %473 = vmatpush1.bf16.msra.mxu0 0
      %474 = vmatprep.subr.bf16.mxu0 0
      %475 = vmatpush1.bf16.msra.mxu0 0
      %476 = vmatprep.subr.bf16.mxu0 0
      %477 = vmatpush1.bf16.msra.mxu0 0
      %478 = vmatprep.subr.bf16.mxu0 0
      %479 = vmatpush1.bf16.msra.mxu0 0
      %480 = vmatprep.subr.bf16.mxu0 0
      %481 = vmatpush1.bf16.msra.mxu0 0
      %482 = vmatprep.subr.bf16.mxu0 0
      %483 = vmatpush1.bf16.msra.mxu0 0
      %484 = vmatprep.subr.bf16.mxu0 0
      %485 = vmatpush1.bf16.msra.mxu0 0
      %486 = vmatprep.subr.bf16.mxu0 0
      %487 = vmatpush1.bf16.msra.mxu0 0
      %488 = vmatprep.mubr.bf16.mxu0 0
      %489 = vmatmul.mubr.bf16.gmra.mrb[0].mxu0 %v445
      %v490 = vpop.f32.mrb[0].mxu0
      %v491 = vadd.f32 %v417, %v490
      %v492 = vpop.f32.mrb[0].mxu0
      %v493 = vpop.f32.mrb[0].mxu0
      %v494 = vadd.f32 %v417, %v493
      %v495 = vpop.f32.mrb[0].mxu0
      %496 = vmatprep.mubr.bf16.mxu0 0
      %497 = vmatmul.mubr.bf16.gmra.mrb[0].mxu0 %v448
      %v498 = vpop.f32.mrb[0].mxu0
      %v499 = vadd.f32 %v417, %v498
      %v500 = vpop.f32.mrb[0].mxu0
      %v501 = vpop.f32.mrb[0].mxu0
      %v502 = vadd.f32 %v417, %v501
      %v503 = vpop.f32.mrb[0].mxu0
      %504 = vmatprep.mubr.bf16.mxu0 0
      %505 = vmatmul.mubr.bf16.gmra.mrb[0].mxu0 %v451
      %v506 = vpop.f32.mrb[0].mxu0
      %v507 = vadd.f32 %v417, %v506
      %v508 = vpop.f32.mrb[0].mxu0
      %v509 = vpop.f32.mrb[0].mxu0
      %v510 = vadd.f32 %v417, %v509
      %v511 = vpop.f32.mrb[0].mxu0
      %512 = vmatprep.mubr.bf16.mxu0 0
      %513 = vmatmul.mubr.bf16.gmra.mrb[0].mxu0 %v454
      %v514 = vpop.f32.mrb[0].mxu0
      %v515 = vadd.f32 %v417, %v514
      %v516 = vpop.f32.mrb[0].mxu0
      %v517 = vpop.f32.mrb[0].mxu0
      %v518 = vadd.f32 %v417, %v517
      %v519 = vpop.f32.mrb[0].mxu0
      %520 = vdwg.mxu0
      %v521 = vpack.c.bf16 %v494, %v491
      %v522 = vpack.c.bf16 %v502, %v499
      %v523 = vpack.c.bf16 %v510, %v507
      %v524 = vpack.c.bf16 %v518, %v515
      %v525 = vmax.bf16 %v521, 0
      %v526 = vmax.bf16 %v522, 0
      %v527 = vmax.bf16 %v523, 0
      %v528 = vmax.bf16 %v524, 0
      %v529 = vld [vmem:[%s5] sm:$0xf]
      %v530 = vld [vmem:[%s5 + $0x4] sm:$0xf]
      %v531 = vld [vmem:[%s5 + $0x8] sm:$0xf]
      %v532 = vld [vmem:[%s5 + $0xc] sm:$0xf]
      %v533 = vld [vmem:[%s5 + $0x10] sm:$0xf]
      %v534 = vld [vmem:[%s5 + $0x14] sm:$0xf]
      %v535 = vld [vmem:[%s6] sm:$0x1]
      %v537 = vlaneseq
      %v538 = vshrl.u32 %v537, 7
      %v539 = vsub.s32 0, %v538
      %v540 = vrot.slane %v535, %v539
      %v548 = vunpack.c.l.b16 %v529
      %v549 = vunpack.c.l.b16 %v530
      %v550 = vunpack.c.l.b16 %v531
      %v551 = vunpack.c.l.b16 %v532
      %v552 = vunpack.c.l.b16 %v533
      %v553 = vunpack.c.l.b16 %v534
      %v554 = vpack.c.b16 %v549, %v548
      %v555 = vpack.c.b16 %v551, %v550
      %v556 = vpack.c.b16 %v553, %v552
      %vm560 = vcmask 392192
      %v562 = vsel %vm560, %v525, 0
      %v565 = vsel %vm560, %v526, 0
      %v568 = vsel %vm560, %v527, 0
      %v571 = vsel %vm560, %v528, 0
      %573 = vmatprep.subr.bf16.mxu0 0
      %574 = vmatpush1.bf16.msra.mxu0 %v554
      %575 = vmatprep.subr.bf16.mxu0 0
      %576 = vmatpush1.bf16.msra.mxu0 %v555
      %577 = vmatprep.subr.bf16.mxu0 0
      %578 = vmatpush1.bf16.msra.mxu0 %v556
      %579 = vmatprep.subr.bf16.mxu0 0
      %580 = vmatpush1.bf16.msra.mxu0 0
      %581 = vmatprep.subr.bf16.mxu0 0
      %582 = vmatpush1.bf16.msra.mxu0 0
      %583 = vmatprep.subr.bf16.mxu0 0
      %584 = vmatpush1.bf16.msra.mxu0 0
      %585 = vmatprep.subr.bf16.mxu0 0
      %586 = vmatpush1.bf16.msra.mxu0 0
      %587 = vmatprep.subr.bf16.mxu0 0
      %588 = vmatpush1.bf16.msra.mxu0 0
      %589 = vmatprep.subr.bf16.mxu0 0
      %590 = vmatpush1.bf16.msra.mxu0 0
      %591 = vmatprep.subr.bf16.mxu0 0
      %592 = vmatpush1.bf16.msra.mxu0 0
      %593 = vmatprep.subr.bf16.mxu0 0
      %594 = vmatpush1.bf16.msra.mxu0 0
      %595 = vmatprep.subr.bf16.mxu0 0
      %596 = vmatpush1.bf16.msra.mxu0 0
      %597 = vmatprep.subr.bf16.mxu0 0
      %598 = vmatpush1.bf16.msra.mxu0 0
      %599 = vmatprep.subr.bf16.mxu0 0
      %600 = vmatpush1.bf16.msra.mxu0 0
      %601 = vmatprep.subr.bf16.mxu0 0
      %602 = vmatpush1.bf16.msra.mxu0 0
      %603 = vmatprep.subr.bf16.mxu0 0
      %604 = vmatpush1.bf16.msra.mxu0 0
      %605 = vmatprep.mubr.bf16.mxu0 0
      %606 = vmatmul.mubr.bf16.gmra.mrb[0].mxu0 %v562
      %v607 = vpop.f32.mrb[0].mxu0
      %v608 = vadd.f32 %v540, %v607
      %v609 = vpop.f32.mrb[0].mxu0
      %v610 = vpop.f32.mrb[0].mxu0
      %v611 = vadd.f32 %v540, %v610
      %v612 = vpop.f32.mrb[0].mxu0
      %613 = vmatprep.mubr.bf16.mxu0 0
      %614 = vmatmul.mubr.bf16.gmra.mrb[0].mxu0 %v565
      %v615 = vpop.f32.mrb[0].mxu0
      %v616 = vadd.f32 %v540, %v615
      %v617 = vpop.f32.mrb[0].mxu0
      %v618 = vpop.f32.mrb[0].mxu0
      %v619 = vadd.f32 %v540, %v618
      %v620 = vpop.f32.mrb[0].mxu0
      %621 = vmatprep.mubr.bf16.mxu0 0
      %622 = vmatmul.mubr.bf16.gmra.mrb[0].mxu0 %v568
      %v623 = vpop.f32.mrb[0].mxu0
      %v624 = vadd.f32 %v540, %v623
      %v625 = vpop.f32.mrb[0].mxu0
      %v626 = vpop.f32.mrb[0].mxu0
      %v627 = vadd.f32 %v540, %v626
      %v628 = vpop.f32.mrb[0].mxu0
      %629 = vmatprep.mubr.bf16.mxu0 0
      %630 = vmatmul.mubr.bf16.gmra.mrb[0].mxu0 %v571
      %v631 = vpop.f32.mrb[0].mxu0
      %v632 = vadd.f32 %v540, %v631
      %v633 = vpop.f32.mrb[0].mxu0
      %v634 = vpop.f32.mrb[0].mxu0
      %v635 = vadd.f32 %v540, %v634
      %v636 = vpop.f32.mrb[0].mxu0
      %637 = vdwg.mxu0
      %vm638 = vcmask 130048
      %v639 = vsel %vm638, %v608, -inf
      %640 = vmax.xlane.f32.xlu0 %v639
      %v641 = vpop.xlane.xlu0 %640
      %v642 = vsel %vm638, %v611, -inf
      %643 = vmax.xlane.f32.xlu0 %v642
      %v644 = vpop.xlane.xlu0 %643
      %v645 = vsel %vm638, %v616, -inf
      %646 = vmax.xlane.f32.xlu0 %v645
      %v647 = vpop.xlane.xlu0 %646
      %v648 = vsel %vm638, %v619, -inf
      %649 = vmax.xlane.f32.xlu0 %v648
      %v650 = vpop.xlane.xlu0 %649
      %v651 = vsel %vm638, %v624, -inf
      %652 = vmax.xlane.f32.xlu0 %v651
      %v653 = vpop.xlane.xlu0 %652
      %v654 = vsel %vm638, %v627, -inf
      %655 = vmax.xlane.f32.xlu0 %v654
      %v656 = vpop.xlane.xlu0 %655
      %v657 = vsel %vm638, %v632, -inf
      %658 = vmax.xlane.f32.xlu0 %v657
      %v659 = vpop.xlane.xlu0 %658
      %v660 = vsel %vm638, %v635, -inf
      %661 = vmax.xlane.f32.xlu0 %v660
      %v662 = vpop.xlane.xlu0 %661
      %v663 = vsub.f32 %v608, %v641
      %v664 = vsub.f32 %v611, %v644
      %v665 = vsub.f32 %v616, %v647
      %v666 = vsub.f32 %v619, %v650
      %v667 = vsub.f32 %v624, %v653
      %v668 = vsub.f32 %v627, %v656
      %v669 = vsub.f32 %v632, %v659
      %v670 = vsub.f32 %v635, %v662
      %v671 = vmul.f32 %v663, 1.442695
      %v672 = vpow.pop %v671
      %v673 = vmul.f32 %v664, 1.442695
      %v674 = vpow.pop %v673
      %v675 = vmul.f32 %v665, 1.442695
      %v676 = vpow.pop %v675
      %v677 = vmul.f32 %v666, 1.442695
      %v678 = vpow.pop %v677
      %v679 = vmul.f32 %v667, 1.442695
      %v680 = vpow.pop %v679
      %v681 = vmul.f32 %v668, 1.442695
      %v682 = vpow.pop %v681
      %v683 = vmul.f32 %v669, 1.442695
      %v684 = vpow.pop %v683
      %v685 = vmul.f32 %v670, 1.442695
      %v686 = vpow.pop %v685
      %v687 = vsel %vm638, %v672, 0.0
      %688 = vadd.xlane.f32.xlu0 %v687
      %v689 = vpop.xlane.xlu0 %688
      %v690 = vsel %vm638, %v674, 0.0
      %691 = vadd.xlane.f32.xlu0 %v690
      %v692 = vpop.xlane.xlu0 %691
      %v693 = vsel %vm638, %v676, 0.0
      %694 = vadd.xlane.f32.xlu0 %v693
      %v695 = vpop.xlane.xlu0 %694
      %v696 = vsel %vm638, %v678, 0.0
      %697 = vadd.xlane.f32.xlu0 %v696
      %v698 = vpop.xlane.xlu0 %697
      %v699 = vsel %vm638, %v680, 0.0
      %700 = vadd.xlane.f32.xlu0 %v699
      %v701 = vpop.xlane.xlu0 %700
      %v702 = vsel %vm638, %v682, 0.0
      %703 = vadd.xlane.f32.xlu0 %v702
      %v704 = vpop.xlane.xlu0 %703
      %v705 = vsel %vm638, %v684, 0.0
      %706 = vadd.xlane.f32.xlu0 %v705
      %v707 = vpop.xlane.xlu0 %706
      %v708 = vsel %vm638, %v686, 0.0
      %709 = vadd.xlane.f32.xlu0 %v708
      %v710 = vpop.xlane.xlu0 %709
      %v711 = vrcp.pop %v689
      %v712 = vrcp.pop %v692
      %v713 = vrcp.pop %v695
      %v714 = vrcp.pop %v698
      %v715 = vrcp.pop %v701
      %v716 = vrcp.pop %v704
      %v717 = vrcp.pop %v707
      %v718 = vrcp.pop %v710
      %v719 = vmul.f32 %v672, %v711
      %v720 = vmul.f32 %v674, %v712
      %v721 = vmul.f32 %v676, %v713
      %v722 = vmul.f32 %v678, %v714
      %v723 = vmul.f32 %v680, %v715
      %v724 = vmul.f32 %v682, %v716
      %v725 = vmul.f32 %v684, %v717
      %v726 = vmul.f32 %v686, %v718
      %727 = vst.msk [vmem:[%s280] sm:$0xff] %vm638, %v719
      %728 = vst.msk [vmem:[%s280 + $0x8] sm:$0xff] %vm638, %v720
      %729 = vst.msk [vmem:[%s280 + $0x10] sm:$0xff] %vm638, %v721
      %730 = vst.msk [vmem:[%s280 + $0x18] sm:$0xff] %vm638, %v722
      %731 = vst.msk [vmem:[%s280 + $0x20] sm:$0xff] %vm638, %v723
      %732 = vst.msk [vmem:[%s280 + $0x28] sm:$0xff] %vm638, %v724
      %733 = vst.msk [vmem:[%s280 + $0x30] sm:$0xff] %vm638, %v725
      %734 = vst.msk [vmem:[%s280 + $0x38] sm:$0xff] %vm638, %v726
      %s735 = smul.u32 8, %s18
      %p736 = scmp.lt.s32.totalorder %s735, 15
      %s737 = scalar_select %p736, %s735, 15
      %s738 = smul.addr %s737, 8
      %s739 = scalar_lea.vmem %s7, %s738
      // Predicated region
      $region49: #{mlp_forward.1} parent=47 // pred_check
        %p740 = pneg %p188
      $region50: #{mlp_forward.1} parent=47 // pred_check_branch
        %742 = sbr.rel (%p740) target = $region52
      $region51: #{mlp_forward.1} parent=47 // pred_region
        %s743 = smul.u32 8, %s18
      $region52: #{mlp_forward.1} parent=47 // pred_fallthru
        _
    $region48: #{mlp_forward.1} parent=5 // pred_fallthru
      _
    %p744 = scmp.le.s32.totalorder 2, %s13
    // Predicated region
    $region53: #{mlp_forward.1} parent=5 // pred_check
      %p745 = pneg %p744
    $region54: #{mlp_forward.1} parent=5 // pred_check_branch
      %747 = sbr.rel (%p745) target = $region56
    $region55: #{mlp_forward.1} parent=5 // pred_region
      %s748 = ssub.s32 %s13, 2
      // Predicated region
      $region57: #{mlp_forward.1} parent=55 // pred_check
        %p749 = pneg %p194
      $region58: #{mlp_forward.1} parent=55 // pred_check_branch
        %751 = sbr.rel (%p749) target = $region60
      $region59: #{mlp_forward.1} parent=55 // pred_region
        %s752 = smul.u32 8, %s19
        %p753 = scmp.lt.s32.totalorder %s752, 15
        %s754 = scalar_select %p753, %s752, 15
        %s755 = smul.addr %s754, 8
        %s756 = scalar_lea.vmem %s7, %s755
      $region60: #{mlp_forward.1} parent=55 // pred_fallthru
        _
    $region56: #{mlp_forward.1} parent=5 // pred_fallthru
      _
  $region6: #{mlp_forward.1} parent=0 // loop_footer
    %s17 = sadd.s32 1, %s13
  $region7: #{mlp_forward.1} parent=0 // loop_footer_branch
    %12 = sbr.rel target = $region3
  $region8: #{mlp_forward.1} parent=0 // loop_exit
    _

</llo_original>
